<compile_context>
chip_gen: v7x
topology: tpu7x:2x2x1
jax: 0.10.0
libtpu: 0.0.40
codegen_flags: <defaults>
</compile_context>

<pallas_src>
import functools

import jax
import jax.numpy as jnp
from jax.experimental import pallas as pl
from jax.experimental.pallas import tpu as pltpu


def mlp_kernel(x_ref, w1_ref, b1_ref, w2_ref, b2_ref,
               w3_ref, b3_ref, w4_ref, b4_ref, o_ref):
    # x_ref: (3, T) bf16; w1/w2/w3: (out, in) bf16; biases: (out, 1) f32;
    # w4_ref: (12, 1) f32 column; b4_ref: (1, 1) f32; o_ref: (1, T) f32.
    h = x_ref[...]                                                        # bf16 straight into MXU
    z = jnp.dot(w1_ref[...], h, preferred_element_type=jnp.float32) + b1_ref[...]
    h = jnp.maximum(z, 0.0).astype(jnp.bfloat16)                          # (24, T)
    z = jnp.dot(w2_ref[...], h, preferred_element_type=jnp.float32) + b2_ref[...]
    h = jnp.maximum(z, 0.0).astype(jnp.bfloat16)                          # (40, T)
    z = jnp.dot(w3_ref[...], h, preferred_element_type=jnp.float32) + b3_ref[...]
    h = jnp.maximum(z, 0.0)                                               # (12, T) f32
    # Final 12 -> 1 layer: VPU multiply + sublane (XLU) reduce; output stays lane-dense.
    o = jnp.sum(w4_ref[...] * h, axis=0, keepdims=True) + b4_ref[...]     # (1, T)
    o_ref[...] = o.astype(o_ref.dtype)


def _pick_tile_b(batch, max_tile_b=8192):
    # Multiple of 512 -> whole lane-tiles on both the 128-wide (v5e) and 256-wide (v6e/v7x)
    # MXUs; aim for >= 2 grid steps so v7x's two TensorCores both get work.
    half = ((batch + 1) // 2 + 511) // 512 * 512
    return int(max(512, min(max_tile_b, half)))


def cp1_net_forward(x, params, *, tile_b=None, max_tile_b=8192):
    """x: (B, 3) float32. params: [(w, b)] with w (out, in) and b (out,), PyTorch layout."""
    (w1, b1), (w2, b2), (w3, b3), (w4, b4) = params
    B = x.shape[0]
    if tile_b is None:
        tile_b = _pick_tile_b(B, max_tile_b)
    n_tiles = pl.cdiv(B, tile_b)
    Bp = n_tiles * tile_b

    # Batch-in-lanes + bf16 input stream; transpose+cast+pad fuse into one XLA pass over x.
    xt = jnp.pad(x.T.astype(jnp.bfloat16), ((0, 0), (0, Bp - B)))         # (3, Bp)

    def col(b):
        return b.reshape(-1, 1).astype(jnp.float32)

    w4c = w4.reshape(-1, 1).astype(jnp.float32)                           # (12, 1)

    const = lambda i: (0, 0)   # weights/biases resident across all grid steps (no re-DMA)
    in_specs = [
        pl.BlockSpec((3, tile_b), lambda i: (0, i)),                      # x tile
        pl.BlockSpec(w1.shape, const), pl.BlockSpec((w1.shape[0], 1), const),
        pl.BlockSpec(w2.shape, const), pl.BlockSpec((w2.shape[0], 1), const),
        pl.BlockSpec(w3.shape, const), pl.BlockSpec((w3.shape[0], 1), const),
        pl.BlockSpec(w4c.shape, const), pl.BlockSpec((1, 1), const),
    ]
    out_specs = pl.BlockSpec((1, tile_b), lambda i: (0, i))

    param_bytes = (sum(int(w.size) * 2 for w in (w1, w2, w3))             # bf16 weights
                   + sum(int(a.size) * 4 for a in (b1, b2, b3, w4, b4)))  # f32 biases / w4
    cost = pl.CostEstimate(
        flops=2 * Bp * (3 * 24 + 24 * 40 + 40 * 12 + 12 * 1),
        transcendentals=0,
        bytes_accessed=3 * Bp * 2 + Bp * 4 + param_bytes,
    )

    out_t = pl.pallas_call(
        mlp_kernel,
        out_shape=jax.ShapeDtypeStruct((1, Bp), jnp.float32),
        grid_spec=pltpu.PrefetchScalarGridSpec(
            num_scalar_prefetch=0,
            grid=(n_tiles,),
            in_specs=in_specs,
            out_specs=out_specs,
        ),
        compiler_params=pltpu.CompilerParams(
            dimension_semantics=("parallel",),     # megacore sharding on v7x; no-op on v5e/v6e
            # ~0.7 KB VMEM per batch element (double-buffered x/out + f32/bf16 intermediates):
            # 32 MiB covers tile_b up to ~16K and stays inside v7x's 64 MiB physical VMEM,
            # while overriding v5e's 16 MiB scoped default.
            vmem_limit_bytes=32 * 1024 * 1024,
        ),
        cost_estimate=cost,
    )(xt,
      w1.astype(jnp.bfloat16), col(b1),
      w2.astype(jnp.bfloat16), col(b2),
      w3.astype(jnp.bfloat16), col(b3),
      w4c, col(b4))

    return out_t[:, :B].T                                                 # (B, 1)


def init_params(key):
    # nn.Linear-style init: uniform(-1/sqrt(fan_in), 1/sqrt(fan_in)), PyTorch (out, in) layout.
    dims = [(3, 24), (24, 40), (40, 12), (12, 1)]
    params = []
    for fan_in, fan_out in dims:
        key, kw, kb = jax.random.split(key, 3)
        bound = 1.0 / jnp.sqrt(jnp.float32(fan_in))
        w = jax.random.uniform(kw, (fan_out, fan_in), jnp.float32, -bound, bound)
        b = jax.random.uniform(kb, (fan_out,), jnp.float32, -bound, bound)
        params.append((w, b))
    return params


def reference_forward(x, params):
    # Mirror the kernel's precision recipe (bf16 MXU inputs, f32 accumulation / bias / ReLU)
    # so the comparison isolates kernel correctness rather than bf16 rounding.
    (w1, b1), (w2, b2), (w3, b3), (w4, b4) = params
    h = x.astype(jnp.bfloat16)
    for w, b in ((w1, b1), (w2, b2)):
        z = jnp.dot(h, w.astype(jnp.bfloat16).T, preferred_element_type=jnp.float32) + b
        h = jnp.maximum(z, 0.0).astype(jnp.bfloat16)
    z = jnp.dot(h, w3.astype(jnp.bfloat16).T, preferred_element_type=jnp.float32) + b3
    h = jnp.maximum(z, 0.0)                                               # f32
    return jnp.dot(h, w4.T) + b4                                          # (B, 1) f32


if __name__ == "__main__":
    key = jax.random.PRNGKey(0)
    key, kx = jax.random.split(key)
    B = 1000                                   # not a multiple of 512: exercises padding + 2-tile grid
    x = jax.random.normal(kx, (B, 3), jnp.float32)
    params = init_params(key)

    fwd = jax.jit(functools.partial(cp1_net_forward, params=params))
    out = fwd(x)
    jax.block_until_ready(out)

    ref = reference_forward(x, params)
    assert out.shape == (B, 1)
    # Tolerance covers MXU bf16xbf16->f32 pass vs XLA dot ordering differences.
    assert jnp.allclose(out, ref, atol=1e-2, rtol=1e-2), "mismatch vs pure-JAX reference"
    print("KERNEL_OK")
</pallas_src>

<mosaic_0001>
module attributes {stable_mosaic.version = 11 : i64} {
  func.func @mlp_kernel(%arg0: i32, %arg1: memref<3x512xbf16, #tpu.memory_space<vmem>>, %arg2: memref<24x3xbf16, #tpu.memory_space<vmem>>, %arg3: memref<24x1xf32, #tpu.memory_space<vmem>>, %arg4: memref<40x24xbf16, #tpu.memory_space<vmem>>, %arg5: memref<40x1xf32, #tpu.memory_space<vmem>>, %arg6: memref<12x40xbf16, #tpu.memory_space<vmem>>, %arg7: memref<12x1xf32, #tpu.memory_space<vmem>>, %arg8: memref<12x1xf32, #tpu.memory_space<vmem>>, %arg9: memref<1x1xf32, #tpu.memory_space<vmem>>, %arg10: memref<1x512xf32, #tpu.memory_space<vmem>>) attributes {dimension_semantics = [#tpu.dimension_semantics<parallel>], iteration_bounds = array<i64: 2>, scalar_prefetch = 0 : i64, scratch_operands = 0 : i64, tpu.core_type = #tpu.core_type<tc>, window_params = [{transform_indices = @transform_0, window_bounds = array<i64: 3, 512>}, {pipeline_mode = #tpu.pipeline_mode<synchronous>, transform_indices = @transform_1, window_bounds = array<i64: 24, 3>}, {pipeline_mode = #tpu.pipeline_mode<synchronous>, transform_indices = @transform_2, window_bounds = array<i64: 24, 1>}, {pipeline_mode = #tpu.pipeline_mode<synchronous>, transform_indices = @transform_3, window_bounds = array<i64: 40, 24>}, {pipeline_mode = #tpu.pipeline_mode<synchronous>, transform_indices = @transform_4, window_bounds = array<i64: 40, 1>}, {pipeline_mode = #tpu.pipeline_mode<synchronous>, transform_indices = @transform_5, window_bounds = array<i64: 12, 40>}, {pipeline_mode = #tpu.pipeline_mode<synchronous>, transform_indices = @transform_6, window_bounds = array<i64: 12, 1>}, {pipeline_mode = #tpu.pipeline_mode<synchronous>, transform_indices = @transform_7, window_bounds = array<i64: 12, 1>}, {pipeline_mode = #tpu.pipeline_mode<synchronous>, transform_indices = @transform_8, window_bounds = array<i64: 1, 1>}, {transform_indices = @transform_9, window_bounds = array<i64: 1, 512>}]} {
    %c0 = arith.constant 0 : index
    %c0_0 = arith.constant 0 : index
    %0 = vector.load %arg1[%c0, %c0_0] : memref<3x512xbf16, #tpu.memory_space<vmem>>, vector<3x512xbf16>
    %c0_1 = arith.constant 0 : index
    %c0_2 = arith.constant 0 : index
    %1 = vector.load %arg2[%c0_1, %c0_2] : memref<24x3xbf16, #tpu.memory_space<vmem>>, vector<24x3xbf16>
    %cst = arith.constant dense<0.000000e+00> : vector<24x512xf32>
    %2 = tpu.matmul %1, %0, %cst {dimension_numbers = #tpu.dot_dimension_numbers<[1], [0], [0], [1], [0, 0, 1, 1], [], []>} : vector<24x3xbf16>, vector<3x512xbf16>, vector<24x512xf32> -> vector<24x512xf32>
    %c0_3 = arith.constant 0 : index
    %c0_4 = arith.constant 0 : index
    %3 = vector.load %arg3[%c0_3, %c0_4] : memref<24x1xf32, #tpu.memory_space<vmem>>, vector<24x1xf32>
    %4 = vector.broadcast %3 : vector<24x1xf32> to vector<24x512xf32>
    %5 = arith.addf %2, %4 : vector<24x512xf32>
    %cst_5 = arith.constant 0.000000e+00 : f32
    %6 = vector.broadcast %cst_5 : f32 to vector<24x512xf32>
    %7 = arith.maximumf %5, %6 : vector<24x512xf32>
    %8 = arith.truncf %7 : vector<24x512xf32> to vector<24x512xbf16>
    %c0_6 = arith.constant 0 : index
    %c0_7 = arith.constant 0 : index
    %9 = vector.load %arg4[%c0_6, %c0_7] : memref<40x24xbf16, #tpu.memory_space<vmem>>, vector<40x24xbf16>
    %cst_8 = arith.constant dense<0.000000e+00> : vector<40x512xf32>
    %10 = tpu.matmul %9, %8, %cst_8 {dimension_numbers = #tpu.dot_dimension_numbers<[1], [0], [0], [1], [0, 0, 1, 1], [], []>} : vector<40x24xbf16>, vector<24x512xbf16>, vector<40x512xf32> -> vector<40x512xf32>
    %c0_9 = arith.constant 0 : index
    %c0_10 = arith.constant 0 : index
    %11 = vector.load %arg5[%c0_9, %c0_10] : memref<40x1xf32, #tpu.memory_space<vmem>>, vector<40x1xf32>
    %12 = vector.broadcast %11 : vector<40x1xf32> to vector<40x512xf32>
    %13 = arith.addf %10, %12 : vector<40x512xf32>
    %cst_11 = arith.constant 0.000000e+00 : f32
    %14 = vector.broadcast %cst_11 : f32 to vector<40x512xf32>
    %15 = arith.maximumf %13, %14 : vector<40x512xf32>
    %16 = arith.truncf %15 : vector<40x512xf32> to vector<40x512xbf16>
    %c0_12 = arith.constant 0 : index
    %c0_13 = arith.constant 0 : index
    %17 = vector.load %arg6[%c0_12, %c0_13] : memref<12x40xbf16, #tpu.memory_space<vmem>>, vector<12x40xbf16>
    %cst_14 = arith.constant dense<0.000000e+00> : vector<12x512xf32>
    %18 = tpu.matmul %17, %16, %cst_14 {dimension_numbers = #tpu.dot_dimension_numbers<[1], [0], [0], [1], [0, 0, 1, 1], [], []>} : vector<12x40xbf16>, vector<40x512xbf16>, vector<12x512xf32> -> vector<12x512xf32>
    %c0_15 = arith.constant 0 : index
    %c0_16 = arith.constant 0 : index
    %19 = vector.load %arg7[%c0_15, %c0_16] : memref<12x1xf32, #tpu.memory_space<vmem>>, vector<12x1xf32>
    %20 = vector.broadcast %19 : vector<12x1xf32> to vector<12x512xf32>
    %21 = arith.addf %18, %20 : vector<12x512xf32>
    %cst_17 = arith.constant 0.000000e+00 : f32
    %22 = vector.broadcast %cst_17 : f32 to vector<12x512xf32>
    %23 = arith.maximumf %21, %22 : vector<12x512xf32>
    %c0_18 = arith.constant 0 : index
    %c0_19 = arith.constant 0 : index
    %24 = vector.load %arg8[%c0_18, %c0_19] : memref<12x1xf32, #tpu.memory_space<vmem>>, vector<12x1xf32>
    %25 = vector.broadcast %24 : vector<12x1xf32> to vector<12x512xf32>
    %26 = arith.mulf %25, %23 : vector<12x512xf32>
    %cst_20 = arith.constant dense<0.000000e+00> : vector<512xf32>
    %27 = vector.multi_reduction <add>, %26, %cst_20 [0] : vector<12x512xf32> to vector<512xf32>
    %28 = vector.shape_cast %27 : vector<512xf32> to vector<1x512xf32>
    %c0_21 = arith.constant 0 : index
    %c0_22 = arith.constant 0 : index
    %29 = vector.load %arg9[%c0_21, %c0_22] : memref<1x1xf32, #tpu.memory_space<vmem>>, vector<1x1xf32>
    %30 = vector.broadcast %29 : vector<1x1xf32> to vector<1x512xf32>
    %31 = arith.addf %28, %30 : vector<1x512xf32>
    %c0_23 = arith.constant 0 : index
    %c0_24 = arith.constant 0 : index
    %32 = vector.load %arg10[%c0_23, %c0_24] : memref<1x512xf32, #tpu.memory_space<vmem>>, vector<1x512xf32>
    tpu.vector_store %arg10[%c0_23, %c0_24], %31 {strides = array<i32>} : memref<1x512xf32, #tpu.memory_space<vmem>>, vector<1x512xf32>,
    return
  }
  func.func @transform_0(%arg0: i32) -> (i32, i32) {
    %c0_i32 = arith.constant 0 : i32
    %c0_i32_0 = arith.constant 0 : i32
    return %c0_i32, %arg0 : i32, i32
  }
  func.func @transform_1(%arg0: i32) -> (i32, i32) {
    %c0_i32 = arith.constant 0 : i32
    %c0_i32_0 = arith.constant 0 : i32
    %c0_i32_1 = arith.constant 0 : i32
    return %c0_i32, %c0_i32_0 : i32, i32
  }
  func.func @transform_2(%arg0: i32) -> (i32, i32) {
    %c0_i32 = arith.constant 0 : i32
    %c0_i32_0 = arith.constant 0 : i32
    %c0_i32_1 = arith.constant 0 : i32
    return %c0_i32, %c0_i32_0 : i32, i32
  }
  func.func @transform_3(%arg0: i32) -> (i32, i32) {
    %c0_i32 = arith.constant 0 : i32
    %c0_i32_0 = arith.constant 0 : i32
    %c0_i32_1 = arith.constant 0 : i32
    return %c0_i32, %c0_i32_0 : i32, i32
  }
  func.func @transform_4(%arg0: i32) -> (i32, i32) {
    %c0_i32 = arith.constant 0 : i32
    %c0_i32_0 = arith.constant 0 : i32
    %c0_i32_1 = arith.constant 0 : i32
    return %c0_i32, %c0_i32_0 : i32, i32
  }
  func.func @transform_5(%arg0: i32) -> (i32, i32) {
    %c0_i32 = arith.constant 0 : i32
    %c0_i32_0 = arith.constant 0 : i32
    %c0_i32_1 = arith.constant 0 : i32
    return %c0_i32, %c0_i32_0 : i32, i32
  }
  func.func @transform_6(%arg0: i32) -> (i32, i32) {
    %c0_i32 = arith.constant 0 : i32
    %c0_i32_0 = arith.constant 0 : i32
    %c0_i32_1 = arith.constant 0 : i32
    return %c0_i32, %c0_i32_0 : i32, i32
  }
  func.func @transform_7(%arg0: i32) -> (i32, i32) {
    %c0_i32 = arith.constant 0 : i32
    %c0_i32_0 = arith.constant 0 : i32
    %c0_i32_1 = arith.constant 0 : i32
    return %c0_i32, %c0_i32_0 : i32, i32
  }
  func.func @transform_8(%arg0: i32) -> (i32, i32) {
    %c0_i32 = arith.constant 0 : i32
    %c0_i32_0 = arith.constant 0 : i32
    %c0_i32_1 = arith.constant 0 : i32
    return %c0_i32, %c0_i32_0 : i32, i32
  }
  func.func @transform_9(%arg0: i32) -> (i32, i32) {
    %c0_i32 = arith.constant 0 : i32
    %c0_i32_0 = arith.constant 0 : i32
    return %c0_i32, %arg0 : i32, i32
  }
}

</mosaic_0001>

<llo_original>
// kernel: cp1_net_forward.1
$region0: #{cp1_net_forward.1}
  #allocation0 [shape = 'u32[]', space=smem, size = 0x4, offset = 0x4, fixed_abs, tag = 'smem constant byte address 0x4 - core index']
  #allocation1 [shape = 'u32[144,128]{1,0:T(1,128)}', space=vmem, size = 0x12000, scoped, tag = 'internal scratch']
  #allocation2 [shape = 'f32[1,1]{1,0:T(1,128)S(1)}', space=vmem, size = 0x200, scoped, tag = 'scoped memory for cp1_net_forward.1']
  %s0 = inlined_call_operand.vmem [shape: bf16[3,1024], index: 0, kind: input, shape index: {}]
  %s1 = inlined_call_operand.hbm [shape: bf16[24,3], index: 1, kind: input, shape index: {}]
  %s2 = inlined_call_operand.vmem [shape: f32[24,1], index: 2, kind: input, shape index: {}]
  %s3 = inlined_call_operand.vmem [shape: bf16[40,24], index: 3, kind: input, shape index: {}]
  %s4 = inlined_call_operand.vmem [shape: f32[40,1], index: 4, kind: input, shape index: {}]
  %s5 = inlined_call_operand.hbm [shape: bf16[12,40], index: 5, kind: input, shape index: {}]
  %s6 = inlined_call_operand.hbm [shape: f32[12,1], index: 6, kind: input, shape index: {}]
  %s7 = inlined_call_operand.vmem [shape: f32[12,1], index: 7, kind: input, shape index: {}]
  %s8 = inlined_call_operand.<no memory space> [shape: f32[1,1], index: 8, kind: input, shape index: {}]
  %s9 = inlined_call_operand.vmem [shape: f32[1,1024], index: 9, kind: output, shape index: {}]
  %s10 = sld [smem:[#allocation0]]
  $region81: #{cp1_net_forward.1} parent=0
    _
  %s12 = ssub.s32 1, %s10
  %s13 = scalar_select 0, %s12, %s10
  %v14 = vstv %s8
  %15 = vst [vmem:[#allocation2] sm:$0x1] %v14
  $region1: #{cp1_net_forward.1} parent=0
    #allocation3 [shape = 'u8[6144]{0}', space=vmem, size = 0x1800, scoped, tag = 'input window, operand 1, single buffered']
    #allocation4 [shape = 's32[2]{0}', space=sflag, size = 0x8, scoped, tag = 'scoped memory for cp1_net_forward.1']
    #allocation5 [shape = 'u8[4096]{0}', space=vmem, size = 0x1000, scoped, tag = 'input window, operand 5, single buffered']
    #allocation6 [shape = 's32[1]{0}', space=sflag, size = 0x4, scoped, tag = 'scoped memory for cp1_net_forward.1']
    #allocation7 [shape = 'u8[8192]{0}', space=vmem, size = 0x2000, scoped, tag = 'input window, operand 6, single buffered']
    %16 = vsyncpa [#allocation4], 0
    %17 = vsyncpa [#allocation6], 0
    loop: start=0, step=1, limit=4
    $region2: #{cp1_net_forward.1} parent=1 // loop_pre_header
      _
    $region3: #{cp1_net_forward.1} parent=1 // loop_header
      %s19 = sphi 0, %s23
      %p20 = scmp.ge.s32.totalorder %s19, 4
      %s29 = sphi 0, %s31
      %s32 = sphi 0, %s29
      %s33 = sphi 0, %s32
      %s49 = sphi 0, %s33
      %s53 = sphi 0, %s53
      %s55 = sphi 0, %s53
      %s56 = sphi 0, %s55
      %s70 = sphi 0, %s56
      %s74 = sphi 0, %s74
      %s76 = sphi 0, %s74
      %s77 = sphi 0, %s76
      %s91 = sphi 0, %s77
      %s95 = sphi 0, %s95
      %s97 = sphi 0, %s95
      %s98 = sphi 0, %s97
      %s112 = sphi 0, %s98
      %s116 = sphi 0, %s116
      %s118 = sphi 0, %s116
      %s119 = sphi 0, %s118
      %s133 = sphi 0, %s119
      %s137 = sphi 0, %s137
      %s139 = sphi 0, %s137
      %s140 = sphi 0, %s139
      %s154 = sphi 0, %s140
      %s158 = sphi 0, %s158
      %s160 = sphi 0, %s158
      %s161 = sphi 0, %s160
      %s175 = sphi 0, %s161
      %s179 = sphi 0, %s179
      %s181 = sphi 0, %s179
      %s182 = sphi 0, %s181
      %s196 = sphi 0, %s182
      %s200 = sphi 0, %s200
      %s202 = sphi 0, %s200
      %s203 = sphi 0, %s202
      %s217 = sphi 0, %s203
      %s223 = sphi 0, %s225
      %s226 = sphi 0, %s223
      %s227 = sphi 0, %s226
      %s243 = sphi 0, %s227
    $region4: #{cp1_net_forward.1} parent=1 // loop_header_branch
      %22 = sbr.rel (%p20) target = $region8
    $region5: #{cp1_net_forward.1} parent=1 // loop_body
      %s24 = ssub.s32 %s19, 1
      %s25 = ssub.s32 %s19, 2
      %s26 = sadd.s32 %s19, 1
      %s27 = ssub.s32 %s19, %s26
      %p28 = scmp.eq.s32.totalorder %s27, 0
      %s30 = sadd.s32 %s29, 1
      %s31 = scalar_select %p28, %s29, %s30
      %p34 = pneg %p28
      %p35 = scmp.eq.s32.totalorder %s19, 1
      %p36 = por %p34, %p35
      %p37 = scmp.ne.s32.totalorder %s29, %s32
      %p38 = scmp.eq.s32.totalorder %s19, 0
      %p39 = por %p37, %p38
      %p40 = scmp.ne.s32.totalorder %s29, %s32
      %p41 = scmp.eq.s32.totalorder %s24, 1
      %p42 = por %p40, %p41
      %p43 = scmp.ne.s32.totalorder %s32, %s33
      %p44 = scmp.eq.s32.totalorder %s24, 0
      %p45 = por %p43, %p44
      %p46 = scmp.ne.s32.totalorder %s32, %s33
      %p47 = scmp.eq.s32.totalorder %s25, 1
      %p48 = por %p46, %p47
      %p50 = scmp.ne.s32.totalorder %s33, %s49
      %p51 = scmp.eq.s32.totalorder %s25, 0
      %p52 = por %p50, %p51
      %s54 = sadd.s32 %s53, 1
      %p57 = scmp.eq.s32.totalorder %s19, 1
      %p58 = scmp.ne.s32.totalorder %s53, %s55
      %p59 = scmp.eq.s32.totalorder %s19, 0
      %p60 = por %p58, %p59
      %p61 = scmp.ne.s32.totalorder %s53, %s55
      %p62 = scmp.eq.s32.totalorder %s24, 1
      %p63 = por %p61, %p62
      %p64 = scmp.ne.s32.totalorder %s55, %s56
      %p65 = scmp.eq.s32.totalorder %s24, 0
      %p66 = por %p64, %p65
      %p67 = scmp.ne.s32.totalorder %s55, %s56
      %p68 = scmp.eq.s32.totalorder %s25, 1
      %p69 = por %p67, %p68
      %p71 = scmp.ne.s32.totalorder %s56, %s70
      %p72 = scmp.eq.s32.totalorder %s25, 0
      %p73 = por %p71, %p72
      %s75 = sadd.s32 %s74, 1
      %p78 = scmp.eq.s32.totalorder %s19, 1
      %p79 = scmp.ne.s32.totalorder %s74, %s76
      %p80 = scmp.eq.s32.totalorder %s19, 0
      %p81 = por %p79, %p80
      %p82 = scmp.ne.s32.totalorder %s74, %s76
      %p83 = scmp.eq.s32.totalorder %s24, 1
      %p84 = por %p82, %p83
      %p85 = scmp.ne.s32.totalorder %s76, %s77
      %p86 = scmp.eq.s32.totalorder %s24, 0
      %p87 = por %p85, %p86
      %p88 = scmp.ne.s32.totalorder %s76, %s77
      %p89 = scmp.eq.s32.totalorder %s25, 1
      %p90 = por %p88, %p89
      %p92 = scmp.ne.s32.totalorder %s77, %s91
      %p93 = scmp.eq.s32.totalorder %s25, 0
      %p94 = por %p92, %p93
      %s96 = sadd.s32 %s95, 1
      %p99 = scmp.eq.s32.totalorder %s19, 1
      %p100 = scmp.ne.s32.totalorder %s95, %s97
      %p101 = scmp.eq.s32.totalorder %s19, 0
      %p102 = por %p100, %p101
      %p103 = scmp.ne.s32.totalorder %s95, %s97
      %p104 = scmp.eq.s32.totalorder %s24, 1
      %p105 = por %p103, %p104
      %p106 = scmp.ne.s32.totalorder %s97, %s98
      %p107 = scmp.eq.s32.totalorder %s24, 0
      %p108 = por %p106, %p107
      %p109 = scmp.ne.s32.totalorder %s97, %s98
      %p110 = scmp.eq.s32.totalorder %s25, 1
      %p111 = por %p109, %p110
      %p113 = scmp.ne.s32.totalorder %s98, %s112
      %p114 = scmp.eq.s32.totalorder %s25, 0
      %p115 = por %p113, %p114
      %s117 = sadd.s32 %s116, 1
      %p120 = scmp.eq.s32.totalorder %s19, 1
      %p121 = scmp.ne.s32.totalorder %s116, %s118
      %p122 = scmp.eq.s32.totalorder %s19, 0
      %p123 = por %p121, %p122
      %p124 = scmp.ne.s32.totalorder %s116, %s118
      %p125 = scmp.eq.s32.totalorder %s24, 1
      %p126 = por %p124, %p125
      %p127 = scmp.ne.s32.totalorder %s118, %s119
      %p128 = scmp.eq.s32.totalorder %s24, 0
      %p129 = por %p127, %p128
      %p130 = scmp.ne.s32.totalorder %s118, %s119
      %p131 = scmp.eq.s32.totalorder %s25, 1
      %p132 = por %p130, %p131
      %p134 = scmp.ne.s32.totalorder %s119, %s133
      %p135 = scmp.eq.s32.totalorder %s25, 0
      %p136 = por %p134, %p135
      %s138 = sadd.s32 %s137, 1
      %p141 = scmp.eq.s32.totalorder %s19, 1
      %p142 = scmp.ne.s32.totalorder %s137, %s139
      %p143 = scmp.eq.s32.totalorder %s19, 0
      %p144 = por %p142, %p143
      %p145 = scmp.ne.s32.totalorder %s137, %s139
      %p146 = scmp.eq.s32.totalorder %s24, 1
      %p147 = por %p145, %p146
      %p148 = scmp.ne.s32.totalorder %s139, %s140
      %p149 = scmp.eq.s32.totalorder %s24, 0
      %p150 = por %p148, %p149
      %p151 = scmp.ne.s32.totalorder %s139, %s140
      %p152 = scmp.eq.s32.totalorder %s25, 1
      %p153 = por %p151, %p152
      %p155 = scmp.ne.s32.totalorder %s140, %s154
      %p156 = scmp.eq.s32.totalorder %s25, 0
      %p157 = por %p155, %p156
      %s159 = sadd.s32 %s158, 1
      %p162 = scmp.eq.s32.totalorder %s19, 1
      %p163 = scmp.ne.s32.totalorder %s158, %s160
      %p164 = scmp.eq.s32.totalorder %s19, 0
      %p165 = por %p163, %p164
      %p166 = scmp.ne.s32.totalorder %s158, %s160
      %p167 = scmp.eq.s32.totalorder %s24, 1
      %p168 = por %p166, %p167
      %p169 = scmp.ne.s32.totalorder %s160, %s161
      %p170 = scmp.eq.s32.totalorder %s24, 0
      %p171 = por %p169, %p170
      %p172 = scmp.ne.s32.totalorder %s160, %s161
      %p173 = scmp.eq.s32.totalorder %s25, 1
      %p174 = por %p172, %p173
      %p176 = scmp.ne.s32.totalorder %s161, %s175
      %p177 = scmp.eq.s32.totalorder %s25, 0
      %p178 = por %p176, %p177
      %s180 = sadd.s32 %s179, 1
      %p183 = scmp.eq.s32.totalorder %s19, 1
      %p184 = scmp.ne.s32.totalorder %s179, %s181
      %p185 = scmp.eq.s32.totalorder %s19, 0
      %p186 = por %p184, %p185
      %p187 = scmp.ne.s32.totalorder %s179, %s181
      %p188 = scmp.eq.s32.totalorder %s24, 1
      %p189 = por %p187, %p188
      %p190 = scmp.ne.s32.totalorder %s181, %s182
      %p191 = scmp.eq.s32.totalorder %s24, 0
      %p192 = por %p190, %p191
      %p193 = scmp.ne.s32.totalorder %s181, %s182
      %p194 = scmp.eq.s32.totalorder %s25, 1
      %p195 = por %p193, %p194
      %p197 = scmp.ne.s32.totalorder %s182, %s196
      %p198 = scmp.eq.s32.totalorder %s25, 0
      %p199 = por %p197, %p198
      %s201 = sadd.s32 %s200, 1
      %p204 = scmp.eq.s32.totalorder %s19, 1
      %p205 = scmp.ne.s32.totalorder %s200, %s202
      %p206 = scmp.eq.s32.totalorder %s19, 0
      %p207 = por %p205, %p206
      %p208 = scmp.ne.s32.totalorder %s200, %s202
      %p209 = scmp.eq.s32.totalorder %s24, 1
      %p210 = por %p208, %p209
      %p211 = scmp.ne.s32.totalorder %s202, %s203
      %p212 = scmp.eq.s32.totalorder %s24, 0
      %p213 = por %p211, %p212
      %p214 = scmp.ne.s32.totalorder %s202, %s203
      %p215 = scmp.eq.s32.totalorder %s25, 1
      %p216 = por %p214, %p215
      %p218 = scmp.ne.s32.totalorder %s203, %s217
      %p219 = scmp.eq.s32.totalorder %s25, 0
      %p220 = por %p218, %p219
      %s221 = ssub.s32 %s19, %s26
      %p222 = scmp.eq.s32.totalorder %s221, 0
      %s224 = sadd.s32 %s223, 1
      %s225 = scalar_select %p222, %s223, %s224
      %p228 = pneg %p222
      %p229 = scmp.eq.s32.totalorder %s19, 1
      %p230 = por %p228, %p229
      %p231 = scmp.ne.s32.totalorder %s223, %s226
      %p232 = scmp.eq.s32.totalorder %s19, 0
      %p233 = por %p231, %p232
      %p234 = scmp.ne.s32.totalorder %s223, %s226
      %p235 = scmp.eq.s32.totalorder %s24, 1
      %p236 = por %p234, %p235
      %p237 = scmp.ne.s32.totalorder %s226, %s227
      %p238 = scmp.eq.s32.totalorder %s24, 0
      %p239 = por %p237, %p238
      %p240 = scmp.ne.s32.totalorder %s226, %s227
      %p241 = scmp.eq.s32.totalorder %s25, 1
      %p242 = por %p240, %p241
      %p244 = scmp.ne.s32.totalorder %s227, %s243
      %p245 = scmp.eq.s32.totalorder %s25, 0
      %p246 = por %p244, %p245
      %p247 = scmp.le.s32.totalorder 1, %s19
      %p248 = scmp.lt.s32.totalorder %s19, 3
      %p249 = pnand %p247, %p248
      %p250 = pneg %p249
      // Predicated region
      $region9: #{cp1_net_forward.1} parent=5 // pred_check
        _
      $region10: #{cp1_net_forward.1} parent=5 // pred_check_branch
        %252 = sbr.rel (%p249) target = $region12
      $region11: #{cp1_net_forward.1} parent=5 // pred_region
        %s253 = ssub.s32 %s19, 1
        // Predicated region
        $region13: #{cp1_net_forward.1} parent=11 // pred_check
          %p254 = pneg %p66
        $region14: #{cp1_net_forward.1} parent=11 // pred_check_branch
          %256 = sbr.rel (%p254) target = $region16
        $region15: #{cp1_net_forward.1} parent=11 // pred_region
          %s258 = ssub.s32 192, 192
          %259 = vsyncadd [#allocation4], %s258
          %s260 = sshll.u32 [#allocation3], 4
          %s261 = int_to_ptr.vmem [resolvable:$true] %s260
          %266 = dma.hbm_to_vmem [thread:$0]  %s1, 192, %s261, [#allocation4], 64, 64, 4
        $region16: #{cp1_net_forward.1} parent=11 // pred_fallthru
          _
        // Predicated region
        $region17: #{cp1_net_forward.1} parent=11 // pred_check
          %p267 = pneg %p87
        $region18: #{cp1_net_forward.1} parent=11 // pred_check_branch
          %269 = sbr.rel (%p267) target = $region20
        $region19: #{cp1_net_forward.1} parent=11 // pred_region
          _
        $region20: #{cp1_net_forward.1} parent=11 // pred_fallthru
          _
        // Predicated region
        $region21: #{cp1_net_forward.1} parent=11 // pred_check
          %p270 = pneg %p108
        $region22: #{cp1_net_forward.1} parent=11 // pred_check_branch
          %272 = sbr.rel (%p270) target = $region24
        $region23: #{cp1_net_forward.1} parent=11 // pred_region
          _
        $region24: #{cp1_net_forward.1} parent=11 // pred_fallthru
          _
        // Predicated region
        $region25: #{cp1_net_forward.1} parent=11 // pred_check
          %p273 = pneg %p129
        $region26: #{cp1_net_forward.1} parent=11 // pred_check_branch
          %275 = sbr.rel (%p273) target = $region28
        $region27: #{cp1_net_forward.1} parent=11 // pred_region
          _
        $region28: #{cp1_net_forward.1} parent=11 // pred_fallthru
          _
        // Predicated region
        $region29: #{cp1_net_forward.1} parent=11 // pred_check
          %p276 = pneg %p150
        $region30: #{cp1_net_forward.1} parent=11 // pred_check_branch
          %278 = sbr.rel (%p276) target = $region32
        $region31: #{cp1_net_forward.1} parent=11 // pred_region
          %s280 = ssub.s32 128, 128
          %281 = vsyncadd [#allocation6], %s280
          %s282 = sshll.u32 [#allocation5], 4
          %s283 = int_to_ptr.vmem [resolvable:$true] %s282
          %288 = dma.hbm_to_vmem [thread:$0]  %s5, 128, %s283, [#allocation6], 64, 64, 4
        $region32: #{cp1_net_forward.1} parent=11 // pred_fallthru
          _
        // Predicated region
        $region33: #{cp1_net_forward.1} parent=11 // pred_check
          %p289 = pneg %p171
        $region34: #{cp1_net_forward.1} parent=11 // pred_check_branch
          %291 = sbr.rel (%p289) target = $region36
        $region35: #{cp1_net_forward.1} parent=11 // pred_region
          %s293 = ssub.s32 256, 256
          %294 = vsyncadd [#allocation6], %s293
          %s295 = sshll.u32 [#allocation7], 4
          %s296 = int_to_ptr.vmem [resolvable:$true] %s295
          %301 = dma.hbm_to_vmem [thread:$0]  %s6, 256, %s296, [#allocation6], 128, 128, 8
        $region36: #{cp1_net_forward.1} parent=11 // pred_fallthru
          _
        // Predicated region
        $region37: #{cp1_net_forward.1} parent=11 // pred_check
          %p302 = pneg %p192
        $region38: #{cp1_net_forward.1} parent=11 // pred_check_branch
          %304 = sbr.rel (%p302) target = $region40
        $region39: #{cp1_net_forward.1} parent=11 // pred_region
          _
        $region40: #{cp1_net_forward.1} parent=11 // pred_fallthru
          _
        // Predicated region
        $region41: #{cp1_net_forward.1} parent=11 // pred_check
          %p305 = pneg %p213
        $region42: #{cp1_net_forward.1} parent=11 // pred_check_branch
          %307 = sbr.rel (%p305) target = $region44
        $region43: #{cp1_net_forward.1} parent=11 // pred_region
          _
        $region44: #{cp1_net_forward.1} parent=11 // pred_fallthru
          _
      $region12: #{cp1_net_forward.1} parent=5 // pred_fallthru
        _
      %p308 = scmp.lt.s32.totalorder %s19, 2
      // Predicated region
      $region45: #{cp1_net_forward.1} parent=5 // pred_check
        %p309 = pneg %p308
      $region46: #{cp1_net_forward.1} parent=5 // pred_check_branch
        %311 = sbr.rel (%p309) target = $region48
      $region47: #{cp1_net_forward.1} parent=5 // pred_region
        // Predicated region
        $region49: #{cp1_net_forward.1} parent=47 // pred_check
          %p312 = pneg %p39
        $region50: #{cp1_net_forward.1} parent=47 // pred_check_branch
          %314 = sbr.rel (%p312) target = $region52
        $region51: #{cp1_net_forward.1} parent=47 // pred_region
          %s315 = smul.u32 4, %s19
          %p316 = scmp.lt.s32.totalorder %s315, 7
          %s317 = scalar_select %p316, %s315, 7
          %s318 = smul.addr %s317, 2
          %s319 = scalar_lea.vmem %s0, %s318
          %s320 = smul.u32 4, %s19
        $region52: #{cp1_net_forward.1} parent=47 // pred_fallthru
          _
      $region48: #{cp1_net_forward.1} parent=5 // pred_fallthru
        _
      %p321 = scmp.le.s32.totalorder 1, %s19
      %p322 = scmp.lt.s32.totalorder %s19, 3
      %p323 = pnand %p321, %p322
      %p324 = pneg %p323
      // Predicated region
      $region53: #{cp1_net_forward.1} parent=5 // pred_check
        _
      $region54: #{cp1_net_forward.1} parent=5 // pred_check_branch
        %326 = sbr.rel (%p323) target = $region56
      $region55: #{cp1_net_forward.1} parent=5 // pred_region
        %s327 = ssub.s32 %s19, 1
        // Predicated region
        $region57: #{cp1_net_forward.1} parent=55 // pred_check
          %p328 = pneg %p66
        $region58: #{cp1_net_forward.1} parent=55 // pred_check_branch
          %330 = sbr.rel (%p328) target = $region60
        $region59: #{cp1_net_forward.1} parent=55 // pred_region
          %331 = dma.done [#allocation4], 192
        $region60: #{cp1_net_forward.1} parent=55 // pred_fallthru
          _
        // Predicated region
        $region61: #{cp1_net_forward.1} parent=55 // pred_check
          %p332 = pneg %p150
        $region62: #{cp1_net_forward.1} parent=55 // pred_check_branch
          %334 = sbr.rel (%p332) target = $region64
        $region63: #{cp1_net_forward.1} parent=55 // pred_region
          %335 = dma.done [#allocation6], 128
        $region64: #{cp1_net_forward.1} parent=55 // pred_fallthru
          _
        // Predicated region
        $region65: #{cp1_net_forward.1} parent=55 // pred_check
          %p336 = pneg %p171
        $region66: #{cp1_net_forward.1} parent=55 // pred_check_branch
          %338 = sbr.rel (%p336) target = $region68
        $region67: #{cp1_net_forward.1} parent=55 // pred_region
          %339 = dma.done [#allocation6], 256
        $region68: #{cp1_net_forward.1} parent=55 // pred_fallthru
          _
        %s340 = smul.u32 4, %s24
        %p341 = scmp.lt.s32.totalorder %s340, 7
        %s342 = scalar_select %p341, %s340, 7
        %s343 = smul.addr %s342, 2
        %s344 = scalar_lea.vmem %s0, %s343
        %p345 = pneg %p45
        %p346 = pneg %p42
        %p347 = pneg %p66
        %p348 = pneg %p63
        %p349 = pneg %p87
        %p350 = pneg %p84
        %p351 = pneg %p108
        %p352 = pneg %p105
        %p353 = pneg %p129
        %p354 = pneg %p126
        %p355 = pneg %p150
        %p356 = pneg %p147
        %p357 = pneg %p171
        %p358 = pneg %p168
        %p359 = pneg %p192
        %p360 = pneg %p189
        %p361 = pneg %p213
        %p362 = pneg %p210
        %p363 = pneg %p239
        %p364 = pneg %p236
        %s365 = smul.u32 4, %s24
        %p366 = scmp.lt.s32.totalorder %s365, 7
        %s367 = scalar_select %p366, %s365, 7
        %s368 = scalar_lea.vmem %s9, %s367
        %s369 = smul.u32 4, %s24
        %p370 = scmp.lt.s32.totalorder %s369, 7
        %s371 = scalar_select %p370, %s369, 7
        %s372 = smul.addr %s371, 2
        %s373 = scalar_lea.vmem %s0, %s372
        %s374 = smul.u32 4, %s24
        %s375 = smul.u32 4, %s24
        %p376 = scmp.lt.s32.totalorder %s375, 7
        %s377 = scalar_select %p376, %s375, 7
        %s378 = scalar_lea.vmem %s9, %s377
        %s379 = smul.u32 4, %s24
        %v381 = vld [vmem:[%s373] sm:$0xff]
        %v382 = vld [vmem:[#allocation3] sm:$0xf]
        %v383 = vld [vmem:[#allocation3 + $0x4] sm:$0xf]
        %v384 = vld [vmem:[#allocation3 + $0x8] sm:$0xf]
        %v385 = vld [vmem:[%s2] sm:$0xff]
        %v386 = vld [vmem:[%s2 + $0x8] sm:$0xff]
        %v387 = vld [vmem:[%s2 + $0x10] sm:$0xff]
        %389 = vset.pattern.permute.xlu0 0
        %390 = vperm.xlu0 %389, %v385
        %v391 = vpop.permute.xlu0 %390
        %394 = vset.pattern.permute.xlu0 0
        %395 = vperm.xlu0 %394, %v386
        %v396 = vpop.permute.xlu0 %395
        %399 = vset.pattern.permute.xlu0 0
        %400 = vperm.xlu0 %399, %v387
        %v401 = vpop.permute.xlu0 %400
        %v406 = vunpack.c.l.b16 %v382
        %v407 = vunpack.c.l.b16 %v383
        %v408 = vunpack.c.l.b16 %v384
        %v409 = vpack.c.b16 %v407, %v406
        %v410 = vpack.c.b16 %v408, %v408
        %v412 = vcombine.high %v381, %v381
        %v414 = vunpack.c.l.s4 1983009808
        %v415 = vunpack.c.0.s8 %v414
        %v416 = vlaneseq
        %v417 = vshrl.u32 %v416, 7
        %v418 = vsub.s32 %v415, %v417
        %v419 = vrot.slane %v381, %v418
        %v421 = vunpack.c.l.s4 1983009808
        %v422 = vunpack.c.0.s8 %v421
        %v423 = vlaneseq
        %v424 = vshrl.u32 %v423, 7
        %v425 = vsub.s32 %v422, %v424
        %v426 = vrot.slane %v412, %v425
        %v427 = vcombine.high %v419, %v419
        %v428 = vcombine.high %v426, %v426
        %vm429 = vcmask 23552
        %v431 = vsel %vm429, %v409, 0
        %v434 = vsel %vm429, %v410, 0
        %vm436 = vcmask 1040384
        %vm437 = vcmask 1041408
        %v438 = vsel %vm436, 4294967295, 65535
        %v439 = vsel %vm437, %v438, 0
        %v441 = vand.u32 %v419, %v439
        %v444 = vand.u32 %v427, %v439
        %v447 = vand.u32 %v426, %v439
        %v450 = vand.u32 %v428, %v439
        %452 = vmatprep.subr.bf16.mxu0 %v444
        %453 = vmatpush1.bf16.msra.mxu0 %v441
        %454 = vmatprep.subr.bf16.mxu0 0
        %455 = vmatpush1.bf16.msra.mxu0 0
        %456 = vmatprep.subr.bf16.mxu0 0
        %457 = vmatpush1.bf16.msra.mxu0 0
        %458 = vmatprep.subr.bf16.mxu0 0
        %459 = vmatpush1.bf16.msra.mxu0 0
        %460 = vmatprep.subr.bf16.mxu0 0
        %461 = vmatpush1.bf16.msra.mxu0 0
        %462 = vmatprep.subr.bf16.mxu0 0
        %463 = vmatpush1.bf16.msra.mxu0 0
        %464 = vmatprep.subr.bf16.mxu0 0
        %465 = vmatpush1.bf16.msra.mxu0 0
        %466 = vmatprep.subr.bf16.mxu0 0
        %467 = vmatpush1.bf16.msra.mxu0 0
        %468 = vmatprep.subr.bf16.mxu0 0
        %469 = vmatpush1.bf16.msra.mxu0 0
        %470 = vmatprep.subr.bf16.mxu0 0
        %471 = vmatpush1.bf16.msra.mxu0 0
        %472 = vmatprep.subr.bf16.mxu0 0
        %473 = vmatpush1.bf16.msra.mxu0 0
        %474 = vmatprep.subr.bf16.mxu0 0
        %475 = vmatpush1.bf16.msra.mxu0 0
        %476 = vmatprep.subr.bf16.mxu0 0
        %477 = vmatpush1.bf16.msra.mxu0 0
        %478 = vmatprep.subr.bf16.mxu0 0
        %479 = vmatpush1.bf16.msra.mxu0 0
        %480 = vmatprep.subr.bf16.mxu0 0
        %481 = vmatpush1.bf16.msra.mxu0 0
        %482 = vmatprep.subr.bf16.mxu0 0
        %483 = vmatpush1.bf16.msra.mxu0 0
        %484 = vmatprep.mubr.bf16.mxu0 0
        %485 = vmatmul.mubr.bf16.gmra.mrb[0].mxu0 %v431
        %v486 = vpop.f32.mrb[0].mxu0
        %v487 = vadd.f32 %v391, %v486
        %v488 = vpop.f32.mrb[0].mxu0
        %v489 = vadd.f32 %v391, %v488
        %v490 = vpop.f32.mrb[0].mxu0
        %v491 = vadd.f32 %v396, %v490
        %v492 = vpop.f32.mrb[0].mxu0
        %v493 = vadd.f32 %v396, %v492
        %494 = vmatprep.mubr.bf16.mxu0 0
        %495 = vmatmul.mubr.bf16.gmra.mrb[0].mxu0 %v434
        %v496 = vpop.f32.mrb[0].mxu0
        %v497 = vadd.f32 %v401, %v496
        %v498 = vpop.f32.mrb[0].mxu0
        %v499 = vadd.f32 %v401, %v498
        %v500 = vpop.f32.mrb[0].mxu0
        %v501 = vpop.f32.mrb[0].mxu0
        %502 = vdwg.mxu0
        %503 = vmatprep.subr.bf16.mxu0 %v450
        %504 = vmatpush1.bf16.msra.mxu0 %v447
        %505 = vmatprep.subr.bf16.mxu0 0
        %506 = vmatpush1.bf16.msra.mxu0 0
        %507 = vmatprep.subr.bf16.mxu0 0
        %508 = vmatpush1.bf16.msra.mxu0 0
        %509 = vmatprep.subr.bf16.mxu0 0
        %510 = vmatpush1.bf16.msra.mxu0 0
        %511 = vmatprep.subr.bf16.mxu0 0
        %512 = vmatpush1.bf16.msra.mxu0 0
        %513 = vmatprep.subr.bf16.mxu0 0
        %514 = vmatpush1.bf16.msra.mxu0 0
        %515 = vmatprep.subr.bf16.mxu0 0
        %516 = vmatpush1.bf16.msra.mxu0 0
        %517 = vmatprep.subr.bf16.mxu0 0
        %518 = vmatpush1.bf16.msra.mxu0 0
        %519 = vmatprep.subr.bf16.mxu0 0
        %520 = vmatpush1.bf16.msra.mxu0 0
        %521 = vmatprep.subr.bf16.mxu0 0
        %522 = vmatpush1.bf16.msra.mxu0 0
        %523 = vmatprep.subr.bf16.mxu0 0
        %524 = vmatpush1.bf16.msra.mxu0 0
        %525 = vmatprep.subr.bf16.mxu0 0
        %526 = vmatpush1.bf16.msra.mxu0 0
        %527 = vmatprep.subr.bf16.mxu0 0
        %528 = vmatpush1.bf16.msra.mxu0 0
        %529 = vmatprep.subr.bf16.mxu0 0
        %530 = vmatpush1.bf16.msra.mxu0 0
        %531 = vmatprep.subr.bf16.mxu0 0
        %532 = vmatpush1.bf16.msra.mxu0 0
        %533 = vmatprep.subr.bf16.mxu0 0
        %534 = vmatpush1.bf16.msra.mxu0 0
        %535 = vmatprep.mubr.bf16.mxu0 0
        %536 = vmatmul.mubr.bf16.gmra.mrb[0].mxu0 %v431
        %v537 = vpop.f32.mrb[0].mxu0
        %v538 = vadd.f32 %v391, %v537
        %v539 = vpop.f32.mrb[0].mxu0
        %v540 = vadd.f32 %v391, %v539
        %v541 = vpop.f32.mrb[0].mxu0
        %v542 = vadd.f32 %v396, %v541
        %v543 = vpop.f32.mrb[0].mxu0
        %v544 = vadd.f32 %v396, %v543
        %545 = vmatprep.mubr.bf16.mxu0 0
        %546 = vmatmul.mubr.bf16.gmra.mrb[0].mxu0 %v434
        %v547 = vpop.f32.mrb[0].mxu0
        %v548 = vadd.f32 %v401, %v547
        %v549 = vpop.f32.mrb[0].mxu0
        %v550 = vadd.f32 %v401, %v549
        %v551 = vpop.f32.mrb[0].mxu0
        %v552 = vpop.f32.mrb[0].mxu0
        %553 = vdwg.mxu0
        %v554 = vmax.f32 %v487, 0.0
        %v555 = vmax.f32 %v489, 0.0
        %v556 = vmax.f32 %v538, 0.0
        %v557 = vmax.f32 %v540, 0.0
        %v558 = vmax.f32 %v491, 0.0
        %v559 = vmax.f32 %v493, 0.0
        %v560 = vmax.f32 %v542, 0.0
        %v561 = vmax.f32 %v544, 0.0
        %v562 = vmax.f32 %v497, 0.0
        %v563 = vmax.f32 %v499, 0.0
        %v564 = vmax.f32 %v548, 0.0
        %v565 = vmax.f32 %v550, 0.0
        %v566 = vpack.c.bf16 %v558, %v554
        %v567 = vpack.c.bf16 %v559, %v555
        %v568 = vpack.c.bf16 %v560, %v556
        %v569 = vpack.c.bf16 %v561, %v557
        %v570 = vpack.c.bf16 %v562, %v562
        %v571 = vpack.c.bf16 %v563, %v563
        %v572 = vpack.c.bf16 %v564, %v564
        %v573 = vpack.c.bf16 %v565, %v565
        %v574 = vld [vmem:[%s3] sm:$0xf]
        %v575 = vld [vmem:[%s3 + $0x4] sm:$0xf]
        %v576 = vld [vmem:[%s3 + $0x8] sm:$0xf]
        %v577 = vld [vmem:[%s3 + $0xc] sm:$0xf]
        %v578 = vld [vmem:[%s3 + $0x10] sm:$0xf]
        %v579 = vld [vmem:[%s4] sm:$0xff]
        %v580 = vld [vmem:[%s4 + $0x8] sm:$0xff]
        %v581 = vld [vmem:[%s4 + $0x10] sm:$0xff]
        %v582 = vld [vmem:[%s4 + $0x18] sm:$0xff]
        %v583 = vld [vmem:[%s4 + $0x20] sm:$0xff]
        %585 = vset.pattern.permute.xlu0 0
        %586 = vperm.xlu0 %585, %v579
        %v587 = vpop.permute.xlu0 %586
        %590 = vset.pattern.permute.xlu0 0
        %591 = vperm.xlu0 %590, %v580
        %v592 = vpop.permute.xlu0 %591
        %595 = vset.pattern.permute.xlu0 0
        %596 = vperm.xlu0 %595, %v581
        %v597 = vpop.permute.xlu0 %596
        %600 = vset.pattern.permute.xlu0 0
        %601 = vperm.xlu0 %600, %v582
        %v602 = vpop.permute.xlu0 %601
        %605 = vset.pattern.permute.xlu0 0
        %606 = vperm.xlu0 %605, %v583
        %v607 = vpop.permute.xlu0 %606
        %v614 = vunpack.c.l.b16 %v574
        %v615 = vunpack.c.l.b16 %v575
        %v616 = vunpack.c.l.b16 %v576
        %v617 = vunpack.c.l.b16 %v577
        %v618 = vunpack.c.l.b16 %v578
        %v619 = vpack.c.b16 %v615, %v614
        %v620 = vpack.c.b16 %v617, %v616
        %v621 = vpack.c.b16 %v618, %v618
        %vm622 = vcmask 195584
        %v624 = vsel %vm622, %v619, 0
        %v627 = vsel %vm622, %v620, 0
        %v630 = vsel %vm622, %v621, 0
        %vm632 = vcmask 1043456
        %v634 = vsel %vm632, %v570, 0
        %v637 = vsel %vm632, %v571, 0
        %v640 = vsel %vm632, %v572, 0
        %v643 = vsel %vm632, %v573, 0
        %645 = vmatprep.subr.bf16.mxu0 %v567
        %646 = vmatpush1.bf16.msra.mxu0 %v566
        %647 = vmatprep.subr.bf16.mxu0 %v637
        %648 = vmatpush1.bf16.msra.mxu0 %v634
        %649 = vmatprep.subr.bf16.mxu0 0
        %650 = vmatpush1.bf16.msra.mxu0 0
        %651 = vmatprep.subr.bf16.mxu0 0
        %652 = vmatpush1.bf16.msra.mxu0 0
        %653 = vmatprep.subr.bf16.mxu0 0
        %654 = vmatpush1.bf16.msra.mxu0 0
        %655 = vmatprep.subr.bf16.mxu0 0
        %656 = vmatpush1.bf16.msra.mxu0 0
        %657 = vmatprep.subr.bf16.mxu0 0
        %658 = vmatpush1.bf16.msra.mxu0 0
        %659 = vmatprep.subr.bf16.mxu0 0
        %660 = vmatpush1.bf16.msra.mxu0 0
        %661 = vmatprep.subr.bf16.mxu0 0
        %662 = vmatpush1.bf16.msra.mxu0 0
        %663 = vmatprep.subr.bf16.mxu0 0
        %664 = vmatpush1.bf16.msra.mxu0 0
        %665 = vmatprep.subr.bf16.mxu0 0
        %666 = vmatpush1.bf16.msra.mxu0 0
        %667 = vmatprep.subr.bf16.mxu0 0
        %668 = vmatpush1.bf16.msra.mxu0 0
        %669 = vmatprep.subr.bf16.mxu0 0
        %670 = vmatpush1.bf16.msra.mxu0 0
        %671 = vmatprep.subr.bf16.mxu0 0
        %672 = vmatpush1.bf16.msra.mxu0 0
        %673 = vmatprep.subr.bf16.mxu0 0
        %674 = vmatpush1.bf16.msra.mxu0 0
        %675 = vmatprep.subr.bf16.mxu0 0
        %676 = vmatpush1.bf16.msra.mxu0 0
        %677 = vmatprep.mubr.bf16.mxu0 0
        %678 = vmatmul.mubr.bf16.gmra.mrb[0].mxu0 %v624
        %v679 = vpop.f32.mrb[0].mxu0
        %v680 = vadd.f32 %v587, %v679
        %v681 = vpop.f32.mrb[0].mxu0
        %v682 = vadd.f32 %v587, %v681
        %v683 = vpop.f32.mrb[0].mxu0
        %v684 = vadd.f32 %v592, %v683
        %v685 = vpop.f32.mrb[0].mxu0
        %v686 = vadd.f32 %v592, %v685
        %687 = vmatprep.mubr.bf16.mxu0 0
        %688 = vmatmul.mubr.bf16.gmra.mrb[0].mxu0 %v627
        %v689 = vpop.f32.mrb[0].mxu0
        %v690 = vadd.f32 %v597, %v689
        %v691 = vpop.f32.mrb[0].mxu0
        %v692 = vadd.f32 %v597, %v691
        %v693 = vpop.f32.mrb[0].mxu0
        %v694 = vadd.f32 %v602, %v693
        %v695 = vpop.f32.mrb[0].mxu0
        %v696 = vadd.f32 %v602, %v695
        %697 = vmatprep.mubr.bf16.mxu0 0
        %698 = vmatmul.mubr.bf16.gmra.mrb[0].mxu0 %v630
        %v699 = vpop.f32.mrb[0].mxu0
        %v700 = vadd.f32 %v607, %v699
        %v701 = vpop.f32.mrb[0].mxu0
        %v702 = vadd.f32 %v607, %v701
        %v703 = vpop.f32.mrb[0].mxu0
        %v704 = vpop.f32.mrb[0].mxu0
        %705 = vdwg.mxu0
        %706 = vmatprep.subr.bf16.mxu0 %v569
        %707 = vmatpush1.bf16.msra.mxu0 %v568
        %708 = vmatprep.subr.bf16.mxu0 %v643
        %709 = vmatpush1.bf16.msra.mxu0 %v640
        %710 = vmatprep.subr.bf16.mxu0 0
        %711 = vmatpush1.bf16.msra.mxu0 0
        %712 = vmatprep.subr.bf16.mxu0 0
        %713 = vmatpush1.bf16.msra.mxu0 0
        %714 = vmatprep.subr.bf16.mxu0 0
        %715 = vmatpush1.bf16.msra.mxu0 0
        %716 = vmatprep.subr.bf16.mxu0 0
        %717 = vmatpush1.bf16.msra.mxu0 0
        %718 = vmatprep.subr.bf16.mxu0 0
        %719 = vmatpush1.bf16.msra.mxu0 0
        %720 = vmatprep.subr.bf16.mxu0 0
        %721 = vmatpush1.bf16.msra.mxu0 0
        %722 = vmatprep.subr.bf16.mxu0 0
        %723 = vmatpush1.bf16.msra.mxu0 0
        %724 = vmatprep.subr.bf16.mxu0 0
        %725 = vmatpush1.bf16.msra.mxu0 0
        %726 = vmatprep.subr.bf16.mxu0 0
        %727 = vmatpush1.bf16.msra.mxu0 0
        %728 = vmatprep.subr.bf16.mxu0 0
        %729 = vmatpush1.bf16.msra.mxu0 0
        %730 = vmatprep.subr.bf16.mxu0 0
        %731 = vmatpush1.bf16.msra.mxu0 0
        %732 = vmatprep.subr.bf16.mxu0 0
        %733 = vmatpush1.bf16.msra.mxu0 0
        %734 = vmatprep.subr.bf16.mxu0 0
        %735 = vmatpush1.bf16.msra.mxu0 0
        %736 = vmatprep.subr.bf16.mxu0 0
        %737 = vmatpush1.bf16.msra.mxu0 0
        %738 = vmatprep.mubr.bf16.mxu0 0
        %739 = vmatmul.mubr.bf16.gmra.mrb[0].mxu0 %v624
        %v740 = vpop.f32.mrb[0].mxu0
        %v741 = vadd.f32 %v587, %v740
        %v742 = vpop.f32.mrb[0].mxu0
        %v743 = vadd.f32 %v587, %v742
        %v744 = vpop.f32.mrb[0].mxu0
        %v745 = vadd.f32 %v592, %v744
        %v746 = vpop.f32.mrb[0].mxu0
        %v747 = vadd.f32 %v592, %v746
        %748 = vmatprep.mubr.bf16.mxu0 0
        %749 = vmatmul.mubr.bf16.gmra.mrb[0].mxu0 %v627
        %v750 = vpop.f32.mrb[0].mxu0
        %v751 = vadd.f32 %v597, %v750
        %v752 = vpop.f32.mrb[0].mxu0
        %v753 = vadd.f32 %v597, %v752
        %v754 = vpop.f32.mrb[0].mxu0
        %v755 = vadd.f32 %v602, %v754
        %v756 = vpop.f32.mrb[0].mxu0
        %v757 = vadd.f32 %v602, %v756
        %758 = vmatprep.mubr.bf16.mxu0 0
        %759 = vmatmul.mubr.bf16.gmra.mrb[0].mxu0 %v630
        %v760 = vpop.f32.mrb[0].mxu0
        %v761 = vadd.f32 %v607, %v760
        %v762 = vpop.f32.mrb[0].mxu0
        %v763 = vadd.f32 %v607, %v762
        %v764 = vpop.f32.mrb[0].mxu0
        %v765 = vpop.f32.mrb[0].mxu0
        %766 = vdwg.mxu0
        %v767 = vmax.f32 %v680, 0.0
        %v768 = vmax.f32 %v682, 0.0
        %v769 = vmax.f32 %v741, 0.0
        %v770 = vmax.f32 %v743, 0.0
        %v771 = vmax.f32 %v684, 0.0
        %v772 = vmax.f32 %v686, 0.0
        %v773 = vmax.f32 %v745, 0.0
        %v774 = vmax.f32 %v747, 0.0
        %v775 = vmax.f32 %v690, 0.0
        %v776 = vmax.f32 %v692, 0.0
        %v777 = vmax.f32 %v751, 0.0
        %v778 = vmax.f32 %v753, 0.0
        %v779 = vmax.f32 %v694, 0.0
        %v780 = vmax.f32 %v696, 0.0
        %v781 = vmax.f32 %v755, 0.0
        %v782 = vmax.f32 %v757, 0.0
        %v783 = vmax.f32 %v700, 0.0
        %v784 = vmax.f32 %v702, 0.0
        %v785 = vmax.f32 %v761, 0.0
        %v786 = vmax.f32 %v763, 0.0
        %v787 = vpack.c.bf16 %v771, %v767
        %v788 = vpack.c.bf16 %v772, %v768
        %v789 = vpack.c.bf16 %v773, %v769
        %v790 = vpack.c.bf16 %v774, %v770
        %v791 = vpack.c.bf16 %v779, %v775
        %v792 = vpack.c.bf16 %v780, %v776
        %v793 = vpack.c.bf16 %v781, %v777
        %v794 = vpack.c.bf16 %v782, %v778
        %v795 = vpack.c.bf16 %v783, %v783
        %v796 = vpack.c.bf16 %v784, %v784
        %v797 = vpack.c.bf16 %v785, %v785
        %v798 = vpack.c.bf16 %v786, %v786
        %v799 = vld [vmem:[#allocation5] sm:$0xf]
        %v800 = vld [vmem:[#allocation5 + $0x4] sm:$0x3]
        %v801 = vld [vmem:[#allocation7] sm:$0xff]
        %v802 = vld [vmem:[#allocation7 + $0x8] sm:$0xf]
        %804 = vset.pattern.permute.xlu0 0
        %805 = vperm.xlu0 %804, %v801
        %v806 = vpop.permute.xlu0 %805
        %809 = vset.pattern.permute.xlu0 0
        %810 = vperm.xlu0 %809, %v802
        %v811 = vpop.permute.xlu0 %810
        %v815 = vunpack.c.l.b16 %v799
        %v816 = vunpack.c.l.b16 %v800
        %v817 = vpack.c.b16 %v816, %v815
        %vm818 = vcmask 326656
        %v820 = vsel %vm818, %v817, 0
        %v823 = vsel %vm632, %v795, 0
        %v826 = vsel %vm632, %v796, 0
        %v829 = vsel %vm632, %v797, 0
        %v832 = vsel %vm632, %v798, 0
        %834 = vmatprep.subr.bf16.mxu0 %v788
        %835 = vmatpush1.bf16.msra.mxu0 %v787
        %836 = vmatprep.subr.bf16.mxu0 %v792
        %837 = vmatpush1.bf16.msra.mxu0 %v791
        %838 = vmatprep.subr.bf16.mxu0 %v826
        %839 = vmatpush1.bf16.msra.mxu0 %v823
        %840 = vmatprep.subr.bf16.mxu0 0
        %841 = vmatpush1.bf16.msra.mxu0 0
        %842 = vmatprep.subr.bf16.mxu0 0
        %843 = vmatpush1.bf16.msra.mxu0 0
        %844 = vmatprep.subr.bf16.mxu0 0
        %845 = vmatpush1.bf16.msra.mxu0 0
        %846 = vmatprep.subr.bf16.mxu0 0
        %847 = vmatpush1.bf16.msra.mxu0 0
        %848 = vmatprep.subr.bf16.mxu0 0
        %849 = vmatpush1.bf16.msra.mxu0 0
        %850 = vmatprep.subr.bf16.mxu0 0
        %851 = vmatpush1.bf16.msra.mxu0 0
        %852 = vmatprep.subr.bf16.mxu0 0
        %853 = vmatpush1.bf16.msra.mxu0 0
        %854 = vmatprep.subr.bf16.mxu0 0
        %855 = vmatpush1.bf16.msra.mxu0 0
        %856 = vmatprep.subr.bf16.mxu0 0
        %857 = vmatpush1.bf16.msra.mxu0 0
        %858 = vmatprep.subr.bf16.mxu0 0
        %859 = vmatpush1.bf16.msra.mxu0 0
        %860 = vmatprep.subr.bf16.mxu0 0
        %861 = vmatpush1.bf16.msra.mxu0 0
        %862 = vmatprep.subr.bf16.mxu0 0
        %863 = vmatpush1.bf16.msra.mxu0 0
        %864 = vmatprep.subr.bf16.mxu0 0
        %865 = vmatpush1.bf16.msra.mxu0 0
        %866 = vmatprep.mubr.bf16.mxu0 0
        %867 = vmatmul.mubr.bf16.gmra.mrb[0].mxu0 %v820
        %v868 = vpop.f32.mrb[0].mxu0
        %v869 = vadd.f32 %v806, %v868
        %v870 = vpop.f32.mrb[0].mxu0
        %v871 = vadd.f32 %v806, %v870
        %v872 = vpop.f32.mrb[0].mxu0
        %v873 = vadd.f32 %v811, %v872
        %v874 = vpop.f32.mrb[0].mxu0
        %v875 = vadd.f32 %v811, %v874
        %876 = vdwg.mxu0
        %877 = vmatprep.subr.bf16.mxu0 %v790
        %878 = vmatpush1.bf16.msra.mxu0 %v789
        %879 = vmatprep.subr.bf16.mxu0 %v794
        %880 = vmatpush1.bf16.msra.mxu0 %v793
        %881 = vmatprep.subr.bf16.mxu0 %v832
        %882 = vmatpush1.bf16.msra.mxu0 %v829
        %883 = vmatprep.subr.bf16.mxu0 0
        %884 = vmatpush1.bf16.msra.mxu0 0
        %885 = vmatprep.subr.bf16.mxu0 0
        %886 = vmatpush1.bf16.msra.mxu0 0
        %887 = vmatprep.subr.bf16.mxu0 0
        %888 = vmatpush1.bf16.msra.mxu0 0
        %889 = vmatprep.subr.bf16.mxu0 0
        %890 = vmatpush1.bf16.msra.mxu0 0
        %891 = vmatprep.subr.bf16.mxu0 0
        %892 = vmatpush1.bf16.msra.mxu0 0
        %893 = vmatprep.subr.bf16.mxu0 0
        %894 = vmatpush1.bf16.msra.mxu0 0
        %895 = vmatprep.subr.bf16.mxu0 0
        %896 = vmatpush1.bf16.msra.mxu0 0
        %897 = vmatprep.subr.bf16.mxu0 0
        %898 = vmatpush1.bf16.msra.mxu0 0
        %899 = vmatprep.subr.bf16.mxu0 0
        %900 = vmatpush1.bf16.msra.mxu0 0
        %901 = vmatprep.subr.bf16.mxu0 0
        %902 = vmatpush1.bf16.msra.mxu0 0
        %903 = vmatprep.subr.bf16.mxu0 0
        %904 = vmatpush1.bf16.msra.mxu0 0
        %905 = vmatprep.subr.bf16.mxu0 0
        %906 = vmatpush1.bf16.msra.mxu0 0
        %907 = vmatprep.subr.bf16.mxu0 0
        %908 = vmatpush1.bf16.msra.mxu0 0
        %909 = vmatprep.mubr.bf16.mxu0 0
        %910 = vmatmul.mubr.bf16.gmra.mrb[0].mxu0 %v820
        %v911 = vpop.f32.mrb[0].mxu0
        %v912 = vadd.f32 %v806, %v911
        %v913 = vpop.f32.mrb[0].mxu0
        %v914 = vadd.f32 %v806, %v913
        %v915 = vpop.f32.mrb[0].mxu0
        %v916 = vadd.f32 %v811, %v915
        %v917 = vpop.f32.mrb[0].mxu0
        %v918 = vadd.f32 %v811, %v917
        %919 = vdwg.mxu0
        %v920 = vmax.f32 %v869, 0.0
        %v921 = vmax.f32 %v871, 0.0
        %v922 = vmax.f32 %v912, 0.0
        %v923 = vmax.f32 %v914, 0.0
        %v924 = vmax.f32 %v873, 0.0
        %v925 = vmax.f32 %v875, 0.0
        %v926 = vmax.f32 %v916, 0.0
        %v927 = vmax.f32 %v918, 0.0
        %v928 = vld [vmem:[%s7] sm:$0xff]
        %v929 = vld [vmem:[%s7 + $0x8] sm:$0xf]
        %931 = vset.pattern.permute.xlu0 0
        %932 = vperm.xlu0 %931, %v928
        %v933 = vpop.permute.xlu0 %932
        %936 = vset.pattern.permute.xlu0 0
        %937 = vperm.xlu0 %936, %v929
        %v938 = vpop.permute.xlu0 %937
        %v940 = vmul.f32 %v933, %v920
        %v941 = vmul.f32 %v933, %v921
        %v942 = vmul.f32 %v933, %v922
        %v943 = vmul.f32 %v933, %v923
        %v944 = vmul.f32 %v938, %v924
        %v945 = vmul.f32 %v938, %v925
        %v946 = vmul.f32 %v938, %v926
        %v947 = vmul.f32 %v938, %v927
        %v948 = vsel %vm632, %v944, 0.0
        %v949 = vadd.f32 %v940, %v948
        %v950 = vrot.slane %v949, 4
        %v951 = vadd.f32 %v949, %v950
        %v952 = vrot.slane %v951, 2
        %v953 = vadd.f32 %v951, %v952
        %v954 = vrot.slane %v953, 1
        %v955 = vadd.f32 %v953, %v954
        %v956 = vsel %vm632, %v945, 0.0
        %v957 = vadd.f32 %v941, %v956
        %v958 = vrot.slane %v957, 4
        %v959 = vadd.f32 %v957, %v958
        %v960 = vrot.slane %v959, 2
        %v961 = vadd.f32 %v959, %v960
        %v962 = vrot.slane %v961, 1
        %v963 = vadd.f32 %v961, %v962
        %v964 = vsel %vm632, %v946, 0.0
        %v965 = vadd.f32 %v942, %v964
        %v966 = vrot.slane %v965, 4
        %v967 = vadd.f32 %v965, %v966
        %v968 = vrot.slane %v967, 2
        %v969 = vadd.f32 %v967, %v968
        %v970 = vrot.slane %v969, 1
        %v971 = vadd.f32 %v969, %v970
        %v972 = vsel %vm632, %v947, 0.0
        %v973 = vadd.f32 %v943, %v972
        %v974 = vrot.slane %v973, 4
        %v975 = vadd.f32 %v973, %v974
        %v976 = vrot.slane %v975, 2
        %v977 = vadd.f32 %v975, %v976
        %v978 = vrot.slane %v977, 1
        %v979 = vadd.f32 %v977, %v978
        %v980 = vld [vmem:[#allocation2] sm:$0x1]
        %982 = vset.pattern.permute.xlu0 0
        %983 = vperm.xlu0 %982, %v980
        %v984 = vpop.permute.xlu0 %983
        %v986 = vlaneseq
        %v987 = vshrl.u32 %v986, 7
        %v988 = vsub.s32 0, %v987
        %v989 = vrot.slane %v984, %v988
        %v990 = vadd.f32 %v955, %v989
        %v991 = vadd.f32 %v963, %v989
        %v992 = vadd.f32 %v971, %v989
        %v993 = vadd.f32 %v979, %v989
        %v998 = vcombine.low %v990, %v991
        %v999 = vcombine.low %v992, %v993
        %v1001 = vunpack.c.l.s4 1966171168
        %v1002 = vunpack.c.0.s8 %v1001
        %v1003 = vlaneseq
        %v1004 = vshrl.u32 %v1003, 7
        %v1005 = vsub.s32 %v1002, %v1004
        %v1006 = vrot.slane %v998, %v1005
        %v1008 = vunpack.c.l.s4 1966171168
        %v1009 = vunpack.c.0.s8 %v1008
        %v1010 = vlaneseq
        %v1011 = vshrl.u32 %v1010, 7
        %v1012 = vsub.s32 %v1009, %v1011
        %v1013 = vrot.slane %v999, %v1012
        %v1014 = vcombine.low %v1006, %v1013
        %v1016 = vunpack.c.l.s4 1966171168
        %v1017 = vunpack.c.0.s8 %v1016
        %v1018 = vlaneseq
        %v1019 = vshrl.u32 %v1018, 7
        %v1020 = vsub.s32 %v1017, %v1019
        %v1021 = vrot.slane %v1014, %v1020
        %v1023 = vlaneseq
        %vm1024 = vcmp.ge.s32.totalorder %v1023, 0
        %vm1025 = vcmp.lt.s32.totalorder %v1023, 512
        %vm1026 = vmand %vm1024, %vm1025
        %1027 = vst.msk [vmem:[%s378] sm:$0xf] %vm1026, %v1021
        %s1028 = smul.u32 4, %s24
        %p1029 = scmp.lt.s32.totalorder %s1028, 7
        %s1030 = scalar_select %p1029, %s1028, 7
        %s1031 = scalar_lea.vmem %s9, %s1030
        // Predicated region
        $region69: #{cp1_net_forward.1} parent=55 // pred_check
          %p1032 = pneg %p236
        $region70: #{cp1_net_forward.1} parent=55 // pred_check_branch
          %1034 = sbr.rel (%p1032) target = $region72
        $region71: #{cp1_net_forward.1} parent=55 // pred_region
          %s1035 = smul.u32 4, %s24
        $region72: #{cp1_net_forward.1} parent=55 // pred_fallthru
          _
      $region56: #{cp1_net_forward.1} parent=5 // pred_fallthru
        _
      %p1036 = scmp.le.s32.totalorder 2, %s19
      // Predicated region
      $region73: #{cp1_net_forward.1} parent=5 // pred_check
        %p1037 = pneg %p1036
      $region74: #{cp1_net_forward.1} parent=5 // pred_check_branch
        %1039 = sbr.rel (%p1037) target = $region76
      $region75: #{cp1_net_forward.1} parent=5 // pred_region
        %s1040 = ssub.s32 %s19, 2
        // Predicated region
        $region77: #{cp1_net_forward.1} parent=75 // pred_check
          %p1041 = pneg %p242
        $region78: #{cp1_net_forward.1} parent=75 // pred_check_branch
          %1043 = sbr.rel (%p1041) target = $region80
        $region79: #{cp1_net_forward.1} parent=75 // pred_region
          %s1044 = smul.u32 4, %s25
          %p1045 = scmp.lt.s32.totalorder %s1044, 7
          %s1046 = scalar_select %p1045, %s1044, 7
          %s1047 = scalar_lea.vmem %s9, %s1046
        $region80: #{cp1_net_forward.1} parent=75 // pred_fallthru
          _
      $region76: #{cp1_net_forward.1} parent=5 // pred_fallthru
        _
    $region6: #{cp1_net_forward.1} parent=1 // loop_footer
      %s23 = sadd.s32 1, %s19
    $region7: #{cp1_net_forward.1} parent=1 // loop_footer_branch
      %18 = sbr.rel target = $region3
    $region8: #{cp1_net_forward.1} parent=1 // loop_exit
      _
    %1048 = vsyncpa [#allocation4], 1
    %s1049 = scalar_lea.sflag [#allocation4], 1
    %1050 = vsyncpa %s1049, 1
    %1051 = vsyncpa [#allocation6], 1

</llo_original>
